<compile_context>
chip_gen: v5e
topology: v5e:2x2
jax: 0.10.0
libtpu: 0.0.40
codegen_flags: <defaults>
</compile_context>

<pallas_src>
import numpy as np
import jax
import jax.numpy as jnp
from jax.experimental import pallas as pl
from jax.experimental.pallas import tpu as pltpu


# --------------------------------------------------------------------------
# Kernels: pure elementwise adds (pe precomputed outside, DMA'd in).
# --------------------------------------------------------------------------

def _pe_add_kernel_3d(pe_ref, x_ref, o_ref):
    # pe_ref: (tS, D) f32;  x_ref / o_ref: (1, tS, D)
    o_ref[...] = (x_ref[...].astype(jnp.float32)
                  + pe_ref[...][None, :, :]).astype(o_ref.dtype)


def _pe_add_kernel_flat(pe_ref, x_ref, o_ref):
    # pe_ref: (1, tC) f32;  x_ref / o_ref: (B, tC)   (sublane broadcast of pe)
    o_ref[...] = (x_ref[...].astype(jnp.float32)
                  + pe_ref[...]).astype(o_ref.dtype)


# --------------------------------------------------------------------------
# Host-side helpers
# --------------------------------------------------------------------------

def _make_pe_table(seq_len, d_model):
    """Exactly mirrors the PyTorch buffer construction (f32)."""
    position = np.arange(seq_len, dtype=np.float32)[:, None]                 # (S, 1)
    div_term = np.exp(np.arange(0, d_model, 2, dtype=np.float32)
                      * (-np.log(10000.0) / d_model))                        # (D/2,)
    pe = np.zeros((seq_len, d_model), dtype=np.float32)
    pe[:, 0::2] = np.sin(position * div_term)
    pe[:, 1::2] = np.cos(position * div_term)
    return jnp.asarray(pe)                                                   # (S, D) f32


def _pick_seq_tile(S, D, itemsize, max_block_bytes=2 << 20):
    """Largest multiple-of-8 tile that divides S, capped at 512 rows / ~2 MiB."""
    if S % 8 != 0:
        return S  # full-extent block is always legal
    cap = max(8, ((max_block_bytes // max(D * itemsize, 1)) // 8) * 8)
    t = max(8, (min(S, 512, cap) // 8) * 8)
    while t >= 8:
        if S % t == 0:
            return t
        t -= 8
    return S


def _pick_col_tile(C, rows, itemsize, max_block_bytes=2 << 20):
    """Largest multiple-of-128 tile that divides C, capped at ~2 MiB per block."""
    cap = max(128, ((max_block_bytes // max(rows * itemsize, 1)) // 128) * 128)
    t = max(128, (min(C, cap) // 128) * 128)
    while t >= 128:
        if C % t == 0:
            return t
        t -= 128
    return C


# --------------------------------------------------------------------------
# Public wrapper
# --------------------------------------------------------------------------

def positional_encoding(x, max_len=100):
    """x: (B, S, D) -> x + pe[:S] (sinusoidal).

    Both branches of the PyTorch forward (cached pe for S <= max_len, and the
    recomputed table for S > max_len) produce identical values, so `max_len`
    does not change the result.
    """
    del max_len
    B, S, D = x.shape
    pe = _make_pe_table(S, D)                       # (S, D) float32
    itemsize = jnp.dtype(x.dtype).itemsize

    if D % 128 != 0 and (S * D) % 128 == 0:
        # Lane-dense path: present a full-128-lane last dim to the kernel.
        C = S * D
        tC = _pick_col_tile(C, B, itemsize)
        x2 = x.reshape(B, C)
        pe2 = pe.reshape(1, C)
        out = pl.pallas_call(
            _pe_add_kernel_flat,
            out_shape=jax.ShapeDtypeStruct((B, C), x.dtype),
            grid_spec=pltpu.PrefetchScalarGridSpec(
                num_scalar_prefetch=0,
                grid=(C // tC,),
                in_specs=[pl.BlockSpec((1, tC), lambda c: (0, c)),   # pe slab
                          pl.BlockSpec((B, tC), lambda c: (0, c))],  # x slab
                out_specs=pl.BlockSpec((B, tC), lambda c: (0, c)),
            ),
            compiler_params=pltpu.CompilerParams(
                dimension_semantics=("parallel",)),
        )(pe2, x2)
        return out.reshape(B, S, D)

    # General 3-D path: tile the sequence axis; batch is the innermost grid
    # axis, so the pe block index is constant across it -> pe stays resident
    # in VMEM and is not re-DMA'd per batch element.
    tS = _pick_seq_tile(S, D, itemsize)
    return pl.pallas_call(
        _pe_add_kernel_3d,
        out_shape=jax.ShapeDtypeStruct((B, S, D), x.dtype),
        grid_spec=pltpu.PrefetchScalarGridSpec(
            num_scalar_prefetch=0,
            grid=(pl.cdiv(S, tS), B),
            in_specs=[pl.BlockSpec((tS, D), lambda s, b: (s, 0)),        # pe tile
                      pl.BlockSpec((1, tS, D), lambda s, b: (b, s, 0))], # x tile
            out_specs=pl.BlockSpec((1, tS, D), lambda s, b: (b, s, 0)),
        ),
        compiler_params=pltpu.CompilerParams(
            dimension_semantics=("parallel", "parallel")),
    )(pe, x)


# --------------------------------------------------------------------------
# Pure-JAX/numpy reference (mirrors the PyTorch module)
# --------------------------------------------------------------------------

def _reference(x):
    B, S, D = x.shape
    position = np.arange(0, S, dtype=np.float32)[:, None]
    div_term = np.exp(np.arange(0, D, 2, dtype=np.float32)
                      * (-np.log(10000.0) / D))
    pe = np.zeros((S, D), dtype=np.float32)
    pe[:, 0::2] = np.sin(position * div_term)
    pe[:, 1::2] = np.cos(position * div_term)
    return x + jnp.asarray(pe)[None, :, :]


if __name__ == "__main__":
    # Shape 1: d_model = 32 (< 128) -> exercises the lane-dense flattened path.
    B, S, D = 2, 8, 32
    x = jax.random.normal(jax.random.PRNGKey(0), (B, S, D), dtype=jnp.float32)
    out = jax.block_until_ready(positional_encoding(x))
    np.testing.assert_allclose(np.asarray(out), np.asarray(_reference(x)),
                               rtol=1e-5, atol=1e-5)

    # Shape 2: d_model = 128 -> exercises the sequence-tiled 3-D path
    # (pe tile resident across the inner batch grid axis).
    B2, S2, D2 = 2, 16, 128
    x2 = jax.random.normal(jax.random.PRNGKey(1), (B2, S2, D2), dtype=jnp.float32)
    out2 = jax.block_until_ready(positional_encoding(x2))
    np.testing.assert_allclose(np.asarray(out2), np.asarray(_reference(x2)),
                               rtol=1e-5, atol=1e-5)

    print("KERNEL_OK")
</pallas_src>

<mosaic_0001>
module attributes {stable_mosaic.version = 11 : i64} {
  func.func @_pe_add_kernel_flat(%arg0: i32, %arg1: memref<1x256xf32, #tpu.memory_space<vmem>>, %arg2: memref<2x256xf32, #tpu.memory_space<vmem>>, %arg3: memref<2x256xf32, #tpu.memory_space<vmem>>) attributes {dimension_semantics = [#tpu.dimension_semantics<parallel>], iteration_bounds = array<i64: 1>, scalar_prefetch = 0 : i64, scratch_operands = 0 : i64, tpu.core_type = #tpu.core_type<tc>, window_params = [{transform_indices = @transform_0, window_bounds = array<i64: 1, 256>}, {transform_indices = @transform_1, window_bounds = array<i64: 2, 256>}, {transform_indices = @transform_2, window_bounds = array<i64: 2, 256>}]} {
    %c0 = arith.constant 0 : index
    %c0_0 = arith.constant 0 : index
    %0 = vector.load %arg2[%c0, %c0_0] : memref<2x256xf32, #tpu.memory_space<vmem>>, vector<2x256xf32>
    %c0_1 = arith.constant 0 : index
    %c0_2 = arith.constant 0 : index
    %1 = vector.load %arg1[%c0_1, %c0_2] : memref<1x256xf32, #tpu.memory_space<vmem>>, vector<1x256xf32>
    %2 = vector.broadcast %1 : vector<1x256xf32> to vector<2x256xf32>
    %3 = arith.addf %0, %2 : vector<2x256xf32>
    %c0_3 = arith.constant 0 : index
    %c0_4 = arith.constant 0 : index
    %4 = vector.load %arg3[%c0_3, %c0_4] : memref<2x256xf32, #tpu.memory_space<vmem>>, vector<2x256xf32>
    tpu.vector_store %arg3[%c0_3, %c0_4], %3 {strides = array<i32>} : memref<2x256xf32, #tpu.memory_space<vmem>>, vector<2x256xf32>,
    return
  }
  func.func @transform_0(%arg0: i32) -> (i32, i32) {
    %c0_i32 = arith.constant 0 : i32
    %c0_i32_0 = arith.constant 0 : i32
    return %c0_i32, %arg0 : i32, i32
  }
  func.func @transform_1(%arg0: i32) -> (i32, i32) {
    %c0_i32 = arith.constant 0 : i32
    %c0_i32_0 = arith.constant 0 : i32
    return %c0_i32, %arg0 : i32, i32
  }
  func.func @transform_2(%arg0: i32) -> (i32, i32) {
    %c0_i32 = arith.constant 0 : i32
    %c0_i32_0 = arith.constant 0 : i32
    return %c0_i32, %arg0 : i32, i32
  }
}

</mosaic_0001>

<llo_original>
// kernel: tpu_custom_call.1
$region0: #{tpu_custom_call.1}
  #allocation0 [shape = 'u32[]', space=smem, size = 0x4, offset = 0x4, fixed_abs, tag = 'smem constant byte address 0x4 - core index']
  #allocation1 [shape = 'u32[72,128]{1,0:T(1,128)}', space=vmem, size = 0x9000, scoped, tag = 'internal scratch']
  %s0 = inlined_call_operand.hbm [shape: f32[1,256], index: 0, kind: input, shape index: {}]
  %s1 = inlined_call_operand.hbm [shape: f32[2,256], index: 1, kind: input, shape index: {}]
  %s2 = inlined_call_operand.hbm [shape: f32[2,256], index: 2, kind: output, shape index: {}]
  %s3 = sld [smem:[#allocation0]]
  $region26: #{tpu_custom_call.1} parent=0
    _
  %s5 = ssub.s32 1, %s3
  %s6 = scalar_select 0, %s5, %s3
  $region1: #{tpu_custom_call.1} parent=0
    #allocation2 [shape = 'u8[1024]{0}', space=vmem, size = 0x400, scoped, tag = 'input window, operand 0, single buffered']
    #allocation3 [shape = 's32[1]{0}', space=sflag, size = 0x4, scoped, tag = 'scoped memory for tpu_custom_call.1']
    #allocation4 [shape = 's32[1]{0}', space=sflag, size = 0x4, scoped, tag = 'scoped memory for tpu_custom_call.1']
    #allocation5 [shape = 'u8[2048]{0}', space=vmem, size = 0x800, scoped, tag = 'input window, operand 1, single buffered']
    #allocation6 [shape = 's32[1]{0}', space=sflag, size = 0x4, scoped, tag = 'scoped memory for tpu_custom_call.1']
    #allocation7 [shape = 'u8[2048]{0}', space=vmem, size = 0x800, scoped, tag = 'output window, operand 0, single buffered']
    %7 = vsyncpa [#allocation3], 0
    %8 = vsyncpa [#allocation6], 0
    %9 = vsyncpa [#allocation4], 0
    // Predicated region
    $region2: #{tpu_custom_call.1} parent=1 // pred_check
      _
    $region3: #{tpu_custom_call.1} parent=1 // pred_check_branch
      %11 = sbr.rel (0) target = $region5
    $region4: #{tpu_custom_call.1} parent=1 // pred_region
      %13 = vsyncadd [#allocation3], 0
      %s15 = sshll.u32 %s0, 4
      %s16 = int_to_ptr.hbm [resolvable:$true] %s15
      %s17 = sshll.u32 [#allocation2], 4
      %s18 = int_to_ptr.vmem [resolvable:$true] %s17
      %20 = dma.hbm_to_vmem [thread:$0]  %s16, 32, %s18, [#allocation3]
    $region5: #{tpu_custom_call.1} parent=1 // pred_fallthru
      _
    // Predicated region
    $region6: #{tpu_custom_call.1} parent=1 // pred_check
      _
    $region7: #{tpu_custom_call.1} parent=1 // pred_check_branch
      %22 = sbr.rel (0) target = $region9
    $region8: #{tpu_custom_call.1} parent=1 // pred_region
      %24 = vsyncadd [#allocation6], 0
      %s26 = sshll.u32 %s1, 4
      %s27 = int_to_ptr.hbm [resolvable:$true] %s26
      %s28 = sshll.u32 [#allocation5], 4
      %s29 = int_to_ptr.vmem [resolvable:$true] %s28
      %31 = dma.hbm_to_vmem [thread:$0]  %s27, 64, %s29, [#allocation6]
    $region9: #{tpu_custom_call.1} parent=1 // pred_fallthru
      _
    // Predicated region
    $region10: #{tpu_custom_call.1} parent=1 // pred_check
      _
    $region11: #{tpu_custom_call.1} parent=1 // pred_check_branch
      %33 = sbr.rel (0) target = $region13
    $region12: #{tpu_custom_call.1} parent=1 // pred_region
      %35 = dma.done [#allocation3], 32
    $region13: #{tpu_custom_call.1} parent=1 // pred_fallthru
      _
    // Predicated region
    $region14: #{tpu_custom_call.1} parent=1 // pred_check
      _
    $region15: #{tpu_custom_call.1} parent=1 // pred_check_branch
      %37 = sbr.rel (0) target = $region17
    $region16: #{tpu_custom_call.1} parent=1 // pred_region
      %39 = dma.done [#allocation6], 64
    $region17: #{tpu_custom_call.1} parent=1 // pred_fallthru
      _
    %v40 = vld [vmem:[#allocation5] sm:$0xf]
    %v41 = vld [vmem:[#allocation2] sm:$0x3]
    %v43 = vperm.slane %v41, 0
    %v44 = vperm.slane %v41, 1
    %v45 = vrot.slane %v44, 6
    %vm46 = vcmask 1041408
    %v47 = vsel %vm46, %v43, %v45
    %v49 = vadd.f32 %v40, %v47
    %50 = vst [vmem:[#allocation7] sm:$0xf] %v49
    // Predicated region
    $region18: #{tpu_custom_call.1} parent=1 // pred_check
      _
    $region19: #{tpu_custom_call.1} parent=1 // pred_check_branch
      %52 = sbr.rel (0) target = $region21
    $region20: #{tpu_custom_call.1} parent=1 // pred_region
      %54 = vsyncadd [#allocation4], 0
      %s56 = sshll.u32 [#allocation7], 4
      %s57 = int_to_ptr.vmem [resolvable:$true] %s56
      %s58 = sshll.u32 %s2, 4
      %s59 = int_to_ptr.hbm [resolvable:$true] %s58
      %61 = dma.vmem_to_hbm [thread:$0]  %s57, 64, %s59, [#allocation4]
    $region21: #{tpu_custom_call.1} parent=1 // pred_fallthru
      _
    // Predicated region
    $region22: #{tpu_custom_call.1} parent=1 // pred_check
      _
    $region23: #{tpu_custom_call.1} parent=1 // pred_check_branch
      %63 = sbr.rel (0) target = $region25
    $region24: #{tpu_custom_call.1} parent=1 // pred_region
      %65 = dma.done [#allocation4], 64
    $region25: #{tpu_custom_call.1} parent=1 // pred_fallthru
      _
    %66 = vsyncpa [#allocation3], 1
    %67 = vsyncpa [#allocation6], 1
    %68 = vsyncpa [#allocation4], 1

</llo_original>
